<compile_context>
chip_gen: v6e
topology: v6e:2x2x1
jax: 0.10.0
libtpu: 0.0.40
codegen_flags: <defaults>
</compile_context>

<pallas_src>
import functools

import jax
import jax.numpy as jnp
from jax import lax
from jax.experimental import pallas as pl
from jax.experimental.pallas import tpu as pltpu


def _adapter_kernel(x_ref, g_ref, beta_ref, w1_ref, b1_ref, w2_ref, b2_ref,
                    o_ref, *, eps):
    # x_ref: (tm, H)   g_ref/beta_ref/b2_ref: (1, H)
    # w1_ref: (D, H)   b1_ref: (1, D)         w2_ref: (H, D)   o_ref: (tm, H)
    x = x_ref[...].astype(jnp.float32)                       # (tm, H)

    # --- LayerNorm over hidden dim (f32 stats, single elementwise pass):
    #     var = E[x^2] - mean^2
    mean = jnp.mean(x, axis=-1, keepdims=True)
    mean_sq = jnp.mean(x * x, axis=-1, keepdims=True)
    var = jnp.maximum(mean_sq - mean * mean, 0.0)
    y = (x - mean) * lax.rsqrt(var + eps)
    y = y * g_ref[...].astype(jnp.float32) + beta_ref[...].astype(jnp.float32)

    # --- Linear(H -> D): PyTorch layout w1 (D, H), contract over H.
    #     Feed the MXU native-dtype operands (no per-step f32 weight cast);
    #     accumulate in f32.
    w1 = w1_ref[...]
    h = lax.dot_general(y.astype(w1.dtype), w1,
                        dimension_numbers=(((1,), (1,)), ((), ())),
                        preferred_element_type=jnp.float32)   # (tm, D)
    h = jnp.maximum(h + b1_ref[...].astype(jnp.float32), 0.0)

    # --- Linear(D -> H): PyTorch layout w2 (H, D), contract over D.
    w2 = w2_ref[...]
    out = lax.dot_general(h.astype(w2.dtype), w2,
                          dimension_numbers=(((1,), (1,)), ((), ())),
                          preferred_element_type=jnp.float32)  # (tm, H)
    out = out + b2_ref[...].astype(jnp.float32)
    o_ref[...] = out.astype(o_ref.dtype)


def wav2vec2_attn_adapter_layer(x, ln_gamma, ln_beta, w1, b1, w2, b2,
                                *, eps=1e-5, row_tile=512):
    """Forward pass of Wav2Vec2AttnAdapterLayer.

    x:        (B, T, H)  hidden states (any float dtype; bf16 recommended)
    ln_gamma: (H,)  ln_beta: (H,)     LayerNorm affine params
    w1: (D, H), b1: (D,)              linear_1 (PyTorch layout: out, in)
    w2: (H, D), b2: (H,)              linear_2
    Returns (B, T, H) in x.dtype.
    """
    B, T, H = x.shape
    D, H1 = w1.shape
    assert H1 == H and w2.shape == (H, D)
    assert b1.shape == (D,) and b2.shape == (H,)

    M = B * T
    x2 = x.reshape(M, H)            # contiguous reshape: no HBM copy

    # --- Row-tile selection (no HBM-side padding / slicing).
    row_tile = max(8, (row_tile // 8) * 8)
    if M > row_tile:
        tm = row_tile               # multiple of 8; partial tail handled by Pallas
    else:
        tm = M                      # full-extent block (no divisibility constraint)
        if M >= 16:
            # Expose >= 2 grid steps so the "parallel" axis can use both
            # TensorCores on v7x megacore.
            half = (((M + 1) // 2) + 7) // 8 * 8
            if half < M:
                tm = half
    grid = (pl.cdiv(M, tm),)

    # --- Parameters in 2-D, PyTorch layouts (VMEM-resident across grid steps).
    g = ln_gamma.reshape(1, H)
    be = ln_beta.reshape(1, H)
    b1_r = b1.reshape(1, D)
    b2_r = b2.reshape(1, H)

    # --- Conservative VMEM budget (double-buffered I/O tiles + resident params
    #     + f32 intermediates + headroom), capped at 64 MiB (fits v7x physical).
    x_bytes = x.dtype.itemsize
    w_bytes = w1.dtype.itemsize
    vmem_est = (
        2 * 2 * tm * H * x_bytes                 # x + out tiles, double-buffered
        + 2 * 2 * 2 * D * H * w_bytes            # w1 + w2
        + 2 * 2 * (2 * H + H + D) * w_bytes      # gamma/beta/b1/b2
        + 5 * tm * H * 4 + 2 * tm * D * 4        # f32 in-kernel intermediates
        + (4 << 20)                              # headroom
    )
    vmem_limit = int(min(max(vmem_est, 16 << 20), 64 << 20))

    kernel = functools.partial(_adapter_kernel, eps=eps)

    out = pl.pallas_call(
        kernel,
        out_shape=jax.ShapeDtypeStruct((M, H), x.dtype),
        grid=grid,
        in_specs=[
            pl.BlockSpec((tm, H), lambda i: (i, 0)),   # x rows   (streamed)
            pl.BlockSpec((1, H), lambda i: (0, 0)),    # gamma    (resident)
            pl.BlockSpec((1, H), lambda i: (0, 0)),    # beta
            pl.BlockSpec((D, H), lambda i: (0, 0)),    # w1 (D,H)
            pl.BlockSpec((1, D), lambda i: (0, 0)),    # b1
            pl.BlockSpec((H, D), lambda i: (0, 0)),    # w2 (H,D)
            pl.BlockSpec((1, H), lambda i: (0, 0)),    # b2
        ],
        out_specs=pl.BlockSpec((tm, H), lambda i: (i, 0)),
        compiler_params=pltpu.CompilerParams(
            dimension_semantics=("parallel",),
            vmem_limit_bytes=vmem_limit,
        ),
    )(x2, g, be, w1, b1_r, w2, b2_r)

    return out.reshape(B, T, H)


def _reference(x, ln_gamma, ln_beta, w1, b1, w2, b2, eps=1e-5):
    # Pure-JAX reference: LayerNorm -> Linear -> ReLU -> Linear (f32, HIGHEST).
    x = x.astype(jnp.float32)
    mean = jnp.mean(x, axis=-1, keepdims=True)
    var = jnp.mean((x - mean) ** 2, axis=-1, keepdims=True)
    xn = (x - mean) / jnp.sqrt(var + eps)
    y = xn * ln_gamma.astype(jnp.float32) + ln_beta.astype(jnp.float32)
    h = jnp.maximum(
        jnp.dot(y, w1.astype(jnp.float32).T, precision=lax.Precision.HIGHEST)
        + b1.astype(jnp.float32), 0.0)
    return (jnp.dot(h, w2.astype(jnp.float32).T, precision=lax.Precision.HIGHEST)
            + b2.astype(jnp.float32))


if __name__ == "__main__":
    # Small synthetic config: hidden_size=32, adapter_attn_dim=16.
    B, T, H, D = 2, 8, 32, 16

    key = jax.random.PRNGKey(0)
    kx, kg, kb, kw1, kb1, kw2, kb2 = jax.random.split(key, 7)

    x = jax.random.normal(kx, (B, T, H), dtype=jnp.float32)
    ln_gamma = 1.0 + 0.1 * jax.random.normal(kg, (H,), dtype=jnp.float32)
    ln_beta = 0.1 * jax.random.normal(kb, (H,), dtype=jnp.float32)

    bound1 = 1.0 / (H ** 0.5)
    w1 = jax.random.uniform(kw1, (D, H), jnp.float32, -bound1, bound1)
    b1 = jax.random.uniform(kb1, (D,), jnp.float32, -bound1, bound1)
    bound2 = 1.0 / (D ** 0.5)
    w2 = jax.random.uniform(kw2, (H, D), jnp.float32, -bound2, bound2)
    b2 = jax.random.uniform(kb2, (H,), jnp.float32, -bound2, bound2)

    # 1) f32 path, tile-aligned rows (M = 16 -> two parallel grid steps).
    y = wav2vec2_attn_adapter_layer(x, ln_gamma, ln_beta, w1, b1, w2, b2)
    y = jax.block_until_ready(y)
    y_ref = _reference(x, ln_gamma, ln_beta, w1, b1, w2, b2)
    assert y.shape == (B, T, H)
    assert jnp.allclose(y, y_ref, atol=1e-4, rtol=1e-4), "f32 mismatch"

    # 2) f32 path with a partial tail block (M = 2*9 = 18, tm = 16).
    T2 = 9
    x_tail = jax.random.normal(jax.random.PRNGKey(1), (B, T2, H), jnp.float32)
    y_tail = wav2vec2_attn_adapter_layer(x_tail, ln_gamma, ln_beta, w1, b1, w2, b2)
    y_tail = jax.block_until_ready(y_tail)
    y_tail_ref = _reference(x_tail, ln_gamma, ln_beta, w1, b1, w2, b2)
    assert y_tail.shape == (B, T2, H)
    assert jnp.allclose(y_tail, y_tail_ref, atol=1e-4, rtol=1e-4), "tail mismatch"

    # 3) bf16 end-to-end path (HBM-facing tensors bf16; f32 LN stats / matmul acc).
    x_bf = x.astype(jnp.bfloat16)
    y_bf = wav2vec2_attn_adapter_layer(
        x_bf,
        ln_gamma.astype(jnp.bfloat16), ln_beta.astype(jnp.bfloat16),
        w1.astype(jnp.bfloat16), b1.astype(jnp.bfloat16),
        w2.astype(jnp.bfloat16), b2.astype(jnp.bfloat16))
    y_bf = jax.block_until_ready(y_bf)
    assert y_bf.dtype == jnp.bfloat16
    y_bf_ref = _reference(x_bf, ln_gamma.astype(jnp.bfloat16),
                          ln_beta.astype(jnp.bfloat16),
                          w1.astype(jnp.bfloat16), b1.astype(jnp.bfloat16),
                          w2.astype(jnp.bfloat16), b2.astype(jnp.bfloat16))
    assert jnp.allclose(y_bf.astype(jnp.float32), y_bf_ref, atol=6e-2), "bf16 mismatch"

    print("KERNEL_OK")
</pallas_src>

<mosaic_0001>
module attributes {stable_mosaic.version = 11 : i64} {
  func.func @_adapter_kernel(%arg0: i32, %arg1: memref<8x32xf32, #tpu.memory_space<vmem>>, %arg2: memref<1x32xf32, #tpu.memory_space<vmem>>, %arg3: memref<1x32xf32, #tpu.memory_space<vmem>>, %arg4: memref<16x32xf32, #tpu.memory_space<vmem>>, %arg5: memref<1x16xf32, #tpu.memory_space<vmem>>, %arg6: memref<32x16xf32, #tpu.memory_space<vmem>>, %arg7: memref<1x32xf32, #tpu.memory_space<vmem>>, %arg8: memref<8x32xf32, #tpu.memory_space<vmem>>) attributes {dimension_semantics = [#tpu.dimension_semantics<parallel>], iteration_bounds = array<i64: 2>, scalar_prefetch = 0 : i64, scratch_operands = 0 : i64, tpu.core_type = #tpu.core_type<tc>, window_params = [{transform_indices = @transform_0, window_bounds = array<i64: 8, 32>}, {pipeline_mode = #tpu.pipeline_mode<synchronous>, transform_indices = @transform_1, window_bounds = array<i64: 1, 32>}, {pipeline_mode = #tpu.pipeline_mode<synchronous>, transform_indices = @transform_2, window_bounds = array<i64: 1, 32>}, {pipeline_mode = #tpu.pipeline_mode<synchronous>, transform_indices = @transform_3, window_bounds = array<i64: 16, 32>}, {pipeline_mode = #tpu.pipeline_mode<synchronous>, transform_indices = @transform_4, window_bounds = array<i64: 1, 16>}, {pipeline_mode = #tpu.pipeline_mode<synchronous>, transform_indices = @transform_5, window_bounds = array<i64: 32, 16>}, {pipeline_mode = #tpu.pipeline_mode<synchronous>, transform_indices = @transform_6, window_bounds = array<i64: 1, 32>}, {transform_indices = @transform_7, window_bounds = array<i64: 8, 32>}]} {
    %c0 = arith.constant 0 : index
    %c0_0 = arith.constant 0 : index
    %0 = vector.load %arg1[%c0, %c0_0] : memref<8x32xf32, #tpu.memory_space<vmem>>, vector<8x32xf32>
    %cst = arith.constant dense<0.000000e+00> : vector<8xf32>
    %1 = vector.multi_reduction <add>, %0, %cst [1] : vector<8x32xf32> to vector<8xf32>
    %2 = vector.shape_cast %1 : vector<8xf32> to vector<8x1xf32>
    %cst_1 = arith.constant 3.200000e+01 : f32
    %3 = vector.broadcast %cst_1 : f32 to vector<8x1xf32>
    %4 = arith.divf %2, %3 : vector<8x1xf32>
    %5 = arith.mulf %0, %0 : vector<8x32xf32>
    %cst_2 = arith.constant dense<0.000000e+00> : vector<8xf32>
    %6 = vector.multi_reduction <add>, %5, %cst_2 [1] : vector<8x32xf32> to vector<8xf32>
    %7 = vector.shape_cast %6 : vector<8xf32> to vector<8x1xf32>
    %cst_3 = arith.constant 3.200000e+01 : f32
    %8 = vector.broadcast %cst_3 : f32 to vector<8x1xf32>
    %9 = arith.divf %7, %8 : vector<8x1xf32>
    %10 = arith.mulf %4, %4 : vector<8x1xf32>
    %11 = arith.subf %9, %10 : vector<8x1xf32>
    %cst_4 = arith.constant 0.000000e+00 : f32
    %12 = vector.broadcast %cst_4 : f32 to vector<8x1xf32>
    %13 = arith.maximumf %11, %12 : vector<8x1xf32>
    %14 = vector.broadcast %4 : vector<8x1xf32> to vector<8x32xf32>
    %15 = arith.subf %0, %14 : vector<8x32xf32>
    %cst_5 = arith.constant 9.99999974E-6 : f32
    %16 = vector.broadcast %cst_5 : f32 to vector<8x1xf32>
    %17 = arith.addf %13, %16 : vector<8x1xf32>
    %18 = math.rsqrt %17 : vector<8x1xf32>
    %19 = vector.broadcast %18 : vector<8x1xf32> to vector<8x32xf32>
    %20 = arith.mulf %15, %19 : vector<8x32xf32>
    %c0_6 = arith.constant 0 : index
    %c0_7 = arith.constant 0 : index
    %21 = vector.load %arg2[%c0_6, %c0_7] : memref<1x32xf32, #tpu.memory_space<vmem>>, vector<1x32xf32>
    %22 = vector.broadcast %21 : vector<1x32xf32> to vector<8x32xf32>
    %23 = arith.mulf %20, %22 : vector<8x32xf32>
    %c0_8 = arith.constant 0 : index
    %c0_9 = arith.constant 0 : index
    %24 = vector.load %arg3[%c0_8, %c0_9] : memref<1x32xf32, #tpu.memory_space<vmem>>, vector<1x32xf32>
    %25 = vector.broadcast %24 : vector<1x32xf32> to vector<8x32xf32>
    %26 = arith.addf %23, %25 : vector<8x32xf32>
    %c0_10 = arith.constant 0 : index
    %c0_11 = arith.constant 0 : index
    %27 = vector.load %arg4[%c0_10, %c0_11] : memref<16x32xf32, #tpu.memory_space<vmem>>, vector<16x32xf32>
    %cst_12 = arith.constant dense<0.000000e+00> : vector<8x16xf32>
    %28 = tpu.matmul %26, %27, %cst_12 {dimension_numbers = #tpu.dot_dimension_numbers<[1], [1], [0], [0], [0, 0, 1, 0], [], []>} : vector<8x32xf32>, vector<16x32xf32>, vector<8x16xf32> -> vector<8x16xf32>
    %c0_13 = arith.constant 0 : index
    %c0_14 = arith.constant 0 : index
    %29 = vector.load %arg5[%c0_13, %c0_14] : memref<1x16xf32, #tpu.memory_space<vmem>>, vector<1x16xf32>
    %30 = vector.broadcast %29 : vector<1x16xf32> to vector<8x16xf32>
    %31 = arith.addf %28, %30 : vector<8x16xf32>
    %cst_15 = arith.constant 0.000000e+00 : f32
    %32 = vector.broadcast %cst_15 : f32 to vector<8x16xf32>
    %33 = arith.maximumf %31, %32 : vector<8x16xf32>
    %c0_16 = arith.constant 0 : index
    %c0_17 = arith.constant 0 : index
    %34 = vector.load %arg6[%c0_16, %c0_17] : memref<32x16xf32, #tpu.memory_space<vmem>>, vector<32x16xf32>
    %cst_18 = arith.constant dense<0.000000e+00> : vector<8x32xf32>
    %35 = tpu.matmul %33, %34, %cst_18 {dimension_numbers = #tpu.dot_dimension_numbers<[1], [1], [0], [0], [0, 0, 1, 0], [], []>} : vector<8x16xf32>, vector<32x16xf32>, vector<8x32xf32> -> vector<8x32xf32>
    %c0_19 = arith.constant 0 : index
    %c0_20 = arith.constant 0 : index
    %36 = vector.load %arg7[%c0_19, %c0_20] : memref<1x32xf32, #tpu.memory_space<vmem>>, vector<1x32xf32>
    %37 = vector.broadcast %36 : vector<1x32xf32> to vector<8x32xf32>
    %38 = arith.addf %35, %37 : vector<8x32xf32>
    %c0_21 = arith.constant 0 : index
    %c0_22 = arith.constant 0 : index
    %39 = vector.load %arg8[%c0_21, %c0_22] : memref<8x32xf32, #tpu.memory_space<vmem>>, vector<8x32xf32>
    tpu.vector_store %arg8[%c0_21, %c0_22], %38 {strides = array<i32>} : memref<8x32xf32, #tpu.memory_space<vmem>>, vector<8x32xf32>,
    return
  }
  func.func @transform_0(%arg0: i32) -> (i32, i32) {
    %c0_i32 = arith.constant 0 : i32
    %c0_i32_0 = arith.constant 0 : i32
    return %arg0, %c0_i32 : i32, i32
  }
  func.func @transform_1(%arg0: i32) -> (i32, i32) {
    %c0_i32 = arith.constant 0 : i32
    %c0_i32_0 = arith.constant 0 : i32
    %c0_i32_1 = arith.constant 0 : i32
    return %c0_i32, %c0_i32_0 : i32, i32
  }
  func.func @transform_2(%arg0: i32) -> (i32, i32) {
    %c0_i32 = arith.constant 0 : i32
    %c0_i32_0 = arith.constant 0 : i32
    %c0_i32_1 = arith.constant 0 : i32
    return %c0_i32, %c0_i32_0 : i32, i32
  }
  func.func @transform_3(%arg0: i32) -> (i32, i32) {
    %c0_i32 = arith.constant 0 : i32
    %c0_i32_0 = arith.constant 0 : i32
    %c0_i32_1 = arith.constant 0 : i32
    return %c0_i32, %c0_i32_0 : i32, i32
  }
  func.func @transform_4(%arg0: i32) -> (i32, i32) {
    %c0_i32 = arith.constant 0 : i32
    %c0_i32_0 = arith.constant 0 : i32
    %c0_i32_1 = arith.constant 0 : i32
    return %c0_i32, %c0_i32_0 : i32, i32
  }
  func.func @transform_5(%arg0: i32) -> (i32, i32) {
    %c0_i32 = arith.constant 0 : i32
    %c0_i32_0 = arith.constant 0 : i32
    %c0_i32_1 = arith.constant 0 : i32
    return %c0_i32, %c0_i32_0 : i32, i32
  }
  func.func @transform_6(%arg0: i32) -> (i32, i32) {
    %c0_i32 = arith.constant 0 : i32
    %c0_i32_0 = arith.constant 0 : i32
    %c0_i32_1 = arith.constant 0 : i32
    return %c0_i32, %c0_i32_0 : i32, i32
  }
  func.func @transform_7(%arg0: i32) -> (i32, i32) {
    %c0_i32 = arith.constant 0 : i32
    %c0_i32_0 = arith.constant 0 : i32
    return %arg0, %c0_i32 : i32, i32
  }
}

</mosaic_0001>

<llo_original>
// kernel: tpu_custom_call.1
$region0: #{tpu_custom_call.1}
  #allocation0 [shape = 'u32[]', space=smem, size = 0x4, offset = 0x4, fixed_abs, tag = 'smem constant byte address 0x4 - core index']
  #allocation1 [shape = 'u32[144,128]{1,0:T(1,128)}', space=vmem, size = 0x12000, scoped, tag = 'internal scratch']
  %s0 = inlined_call_operand.vmem [shape: f32[16,32], index: 0, kind: input, shape index: {}]
  %s1 = inlined_call_operand.vmem [shape: f32[1,32], index: 1, kind: input, shape index: {}]
  %s2 = inlined_call_operand.vmem [shape: f32[1,32], index: 2, kind: input, shape index: {}]
  %s3 = inlined_call_operand.vmem [shape: f32[16,32], index: 3, kind: input, shape index: {}]
  %s4 = inlined_call_operand.vmem [shape: f32[1,16], index: 4, kind: input, shape index: {}]
  %s5 = inlined_call_operand.vmem [shape: f32[32,16], index: 5, kind: input, shape index: {}]
  %s6 = inlined_call_operand.vmem [shape: f32[1,32], index: 6, kind: input, shape index: {}]
  %s7 = inlined_call_operand.hbm [shape: f32[16,32], index: 7, kind: output, shape index: {}]
  %s8 = sld [smem:[#allocation0]]
  $region61: #{tpu_custom_call.1} parent=0
    _
  %s10 = ssub.s32 1, %s8
  %s11 = scalar_select 0, %s10, %s8
  $region1: #{tpu_custom_call.1} parent=0
    #allocation2 [shape = 'u8[8192]{0}', space=vmem, size = 0x2000, scoped, tag = 'output window, operand 0']
    #allocation3 [shape = 's32[2]{0}', space=sflag, size = 0x8, scoped, tag = 'scoped memory for tpu_custom_call.1']
    %12 = vsyncpa [#allocation3], 0
    %s13 = scalar_lea.sflag [#allocation3], 1
    %14 = vsyncpa %s13, 0
    loop: start=0, step=1, limit=4
    $region2: #{tpu_custom_call.1} parent=1 // loop_pre_header
      _
    $region3: #{tpu_custom_call.1} parent=1 // loop_header
      %s16 = sphi 0, %s20
      %p17 = scmp.ge.s32.totalorder %s16, 4
      %s26 = sphi 0, %s28
      %s29 = sphi 0, %s26
      %s30 = sphi 0, %s29
      %s46 = sphi 0, %s30
      %s50 = sphi 0, %s50
      %s52 = sphi 0, %s50
      %s53 = sphi 0, %s52
      %s67 = sphi 0, %s53
      %s71 = sphi 0, %s71
      %s73 = sphi 0, %s71
      %s74 = sphi 0, %s73
      %s88 = sphi 0, %s74
      %s92 = sphi 0, %s92
      %s94 = sphi 0, %s92
      %s95 = sphi 0, %s94
      %s109 = sphi 0, %s95
      %s113 = sphi 0, %s113
      %s115 = sphi 0, %s113
      %s116 = sphi 0, %s115
      %s130 = sphi 0, %s116
      %s134 = sphi 0, %s134
      %s136 = sphi 0, %s134
      %s137 = sphi 0, %s136
      %s151 = sphi 0, %s137
      %s155 = sphi 0, %s155
      %s157 = sphi 0, %s155
      %s158 = sphi 0, %s157
      %s172 = sphi 0, %s158
      %s178 = sphi 0, %s180
      %s181 = sphi 0, %s178
      %s182 = sphi 0, %s181
      %s198 = sphi 0, %s182
    $region4: #{tpu_custom_call.1} parent=1 // loop_header_branch
      %19 = sbr.rel (%p17) target = $region8
    $region5: #{tpu_custom_call.1} parent=1 // loop_body
      %s21 = ssub.s32 %s16, 1
      %s22 = ssub.s32 %s16, 2
      %s23 = sadd.s32 %s16, 1
      %s24 = ssub.s32 %s16, %s23
      %p25 = scmp.eq.s32.totalorder %s24, 0
      %s27 = sadd.s32 %s26, 1
      %s28 = scalar_select %p25, %s26, %s27
      %p31 = pneg %p25
      %p32 = scmp.eq.s32.totalorder %s16, 1
      %p33 = por %p31, %p32
      %p34 = scmp.ne.s32.totalorder %s26, %s29
      %p35 = scmp.eq.s32.totalorder %s16, 0
      %p36 = por %p34, %p35
      %p37 = scmp.ne.s32.totalorder %s26, %s29
      %p38 = scmp.eq.s32.totalorder %s21, 1
      %p39 = por %p37, %p38
      %p40 = scmp.ne.s32.totalorder %s29, %s30
      %p41 = scmp.eq.s32.totalorder %s21, 0
      %p42 = por %p40, %p41
      %p43 = scmp.ne.s32.totalorder %s29, %s30
      %p44 = scmp.eq.s32.totalorder %s22, 1
      %p45 = por %p43, %p44
      %p47 = scmp.ne.s32.totalorder %s30, %s46
      %p48 = scmp.eq.s32.totalorder %s22, 0
      %p49 = por %p47, %p48
      %s51 = sadd.s32 %s50, 1
      %p54 = scmp.eq.s32.totalorder %s16, 1
      %p55 = scmp.ne.s32.totalorder %s50, %s52
      %p56 = scmp.eq.s32.totalorder %s16, 0
      %p57 = por %p55, %p56
      %p58 = scmp.ne.s32.totalorder %s50, %s52
      %p59 = scmp.eq.s32.totalorder %s21, 1
      %p60 = por %p58, %p59
      %p61 = scmp.ne.s32.totalorder %s52, %s53
      %p62 = scmp.eq.s32.totalorder %s21, 0
      %p63 = por %p61, %p62
      %p64 = scmp.ne.s32.totalorder %s52, %s53
      %p65 = scmp.eq.s32.totalorder %s22, 1
      %p66 = por %p64, %p65
      %p68 = scmp.ne.s32.totalorder %s53, %s67
      %p69 = scmp.eq.s32.totalorder %s22, 0
      %p70 = por %p68, %p69
      %s72 = sadd.s32 %s71, 1
      %p75 = scmp.eq.s32.totalorder %s16, 1
      %p76 = scmp.ne.s32.totalorder %s71, %s73
      %p77 = scmp.eq.s32.totalorder %s16, 0
      %p78 = por %p76, %p77
      %p79 = scmp.ne.s32.totalorder %s71, %s73
      %p80 = scmp.eq.s32.totalorder %s21, 1
      %p81 = por %p79, %p80
      %p82 = scmp.ne.s32.totalorder %s73, %s74
      %p83 = scmp.eq.s32.totalorder %s21, 0
      %p84 = por %p82, %p83
      %p85 = scmp.ne.s32.totalorder %s73, %s74
      %p86 = scmp.eq.s32.totalorder %s22, 1
      %p87 = por %p85, %p86
      %p89 = scmp.ne.s32.totalorder %s74, %s88
      %p90 = scmp.eq.s32.totalorder %s22, 0
      %p91 = por %p89, %p90
      %s93 = sadd.s32 %s92, 1
      %p96 = scmp.eq.s32.totalorder %s16, 1
      %p97 = scmp.ne.s32.totalorder %s92, %s94
      %p98 = scmp.eq.s32.totalorder %s16, 0
      %p99 = por %p97, %p98
      %p100 = scmp.ne.s32.totalorder %s92, %s94
      %p101 = scmp.eq.s32.totalorder %s21, 1
      %p102 = por %p100, %p101
      %p103 = scmp.ne.s32.totalorder %s94, %s95
      %p104 = scmp.eq.s32.totalorder %s21, 0
      %p105 = por %p103, %p104
      %p106 = scmp.ne.s32.totalorder %s94, %s95
      %p107 = scmp.eq.s32.totalorder %s22, 1
      %p108 = por %p106, %p107
      %p110 = scmp.ne.s32.totalorder %s95, %s109
      %p111 = scmp.eq.s32.totalorder %s22, 0
      %p112 = por %p110, %p111
      %s114 = sadd.s32 %s113, 1
      %p117 = scmp.eq.s32.totalorder %s16, 1
      %p118 = scmp.ne.s32.totalorder %s113, %s115
      %p119 = scmp.eq.s32.totalorder %s16, 0
      %p120 = por %p118, %p119
      %p121 = scmp.ne.s32.totalorder %s113, %s115
      %p122 = scmp.eq.s32.totalorder %s21, 1
      %p123 = por %p121, %p122
      %p124 = scmp.ne.s32.totalorder %s115, %s116
      %p125 = scmp.eq.s32.totalorder %s21, 0
      %p126 = por %p124, %p125
      %p127 = scmp.ne.s32.totalorder %s115, %s116
      %p128 = scmp.eq.s32.totalorder %s22, 1
      %p129 = por %p127, %p128
      %p131 = scmp.ne.s32.totalorder %s116, %s130
      %p132 = scmp.eq.s32.totalorder %s22, 0
      %p133 = por %p131, %p132
      %s135 = sadd.s32 %s134, 1
      %p138 = scmp.eq.s32.totalorder %s16, 1
      %p139 = scmp.ne.s32.totalorder %s134, %s136
      %p140 = scmp.eq.s32.totalorder %s16, 0
      %p141 = por %p139, %p140
      %p142 = scmp.ne.s32.totalorder %s134, %s136
      %p143 = scmp.eq.s32.totalorder %s21, 1
      %p144 = por %p142, %p143
      %p145 = scmp.ne.s32.totalorder %s136, %s137
      %p146 = scmp.eq.s32.totalorder %s21, 0
      %p147 = por %p145, %p146
      %p148 = scmp.ne.s32.totalorder %s136, %s137
      %p149 = scmp.eq.s32.totalorder %s22, 1
      %p150 = por %p148, %p149
      %p152 = scmp.ne.s32.totalorder %s137, %s151
      %p153 = scmp.eq.s32.totalorder %s22, 0
      %p154 = por %p152, %p153
      %s156 = sadd.s32 %s155, 1
      %p159 = scmp.eq.s32.totalorder %s16, 1
      %p160 = scmp.ne.s32.totalorder %s155, %s157
      %p161 = scmp.eq.s32.totalorder %s16, 0
      %p162 = por %p160, %p161
      %p163 = scmp.ne.s32.totalorder %s155, %s157
      %p164 = scmp.eq.s32.totalorder %s21, 1
      %p165 = por %p163, %p164
      %p166 = scmp.ne.s32.totalorder %s157, %s158
      %p167 = scmp.eq.s32.totalorder %s21, 0
      %p168 = por %p166, %p167
      %p169 = scmp.ne.s32.totalorder %s157, %s158
      %p170 = scmp.eq.s32.totalorder %s22, 1
      %p171 = por %p169, %p170
      %p173 = scmp.ne.s32.totalorder %s158, %s172
      %p174 = scmp.eq.s32.totalorder %s22, 0
      %p175 = por %p173, %p174
      %s176 = ssub.s32 %s16, %s23
      %p177 = scmp.eq.s32.totalorder %s176, 0
      %s179 = sadd.s32 %s178, 1
      %s180 = scalar_select %p177, %s178, %s179
      %p183 = pneg %p177
      %p184 = scmp.eq.s32.totalorder %s16, 1
      %p185 = por %p183, %p184
      %p186 = scmp.ne.s32.totalorder %s178, %s181
      %p187 = scmp.eq.s32.totalorder %s16, 0
      %p188 = por %p186, %p187
      %p189 = scmp.ne.s32.totalorder %s178, %s181
      %p190 = scmp.eq.s32.totalorder %s21, 1
      %p191 = por %p189, %p190
      %p192 = scmp.ne.s32.totalorder %s181, %s182
      %p193 = scmp.eq.s32.totalorder %s21, 0
      %p194 = por %p192, %p193
      %p195 = scmp.ne.s32.totalorder %s181, %s182
      %p196 = scmp.eq.s32.totalorder %s22, 1
      %p197 = por %p195, %p196
      %p199 = scmp.ne.s32.totalorder %s182, %s198
      %p200 = scmp.eq.s32.totalorder %s22, 0
      %p201 = por %p199, %p200
      %p202 = scmp.le.s32.totalorder 1, %s16
      %p203 = scmp.lt.s32.totalorder %s16, 3
      %p204 = pnand %p202, %p203
      %p205 = pneg %p204
      // Predicated region
      $region9: #{tpu_custom_call.1} parent=5 // pred_check
        _
      $region10: #{tpu_custom_call.1} parent=5 // pred_check_branch
        %207 = sbr.rel (%p204) target = $region12
      $region11: #{tpu_custom_call.1} parent=5 // pred_region
        %s208 = ssub.s32 %s16, 1
        // Predicated region
        $region13: #{tpu_custom_call.1} parent=11 // pred_check
          %p209 = pneg %p63
        $region14: #{tpu_custom_call.1} parent=11 // pred_check_branch
          %211 = sbr.rel (%p209) target = $region16
        $region15: #{tpu_custom_call.1} parent=11 // pred_region
          _
        $region16: #{tpu_custom_call.1} parent=11 // pred_fallthru
          _
        // Predicated region
        $region17: #{tpu_custom_call.1} parent=11 // pred_check
          %p212 = pneg %p84
        $region18: #{tpu_custom_call.1} parent=11 // pred_check_branch
          %214 = sbr.rel (%p212) target = $region20
        $region19: #{tpu_custom_call.1} parent=11 // pred_region
          _
        $region20: #{tpu_custom_call.1} parent=11 // pred_fallthru
          _
        // Predicated region
        $region21: #{tpu_custom_call.1} parent=11 // pred_check
          %p215 = pneg %p105
        $region22: #{tpu_custom_call.1} parent=11 // pred_check_branch
          %217 = sbr.rel (%p215) target = $region24
        $region23: #{tpu_custom_call.1} parent=11 // pred_region
          _
        $region24: #{tpu_custom_call.1} parent=11 // pred_fallthru
          _
        // Predicated region
        $region25: #{tpu_custom_call.1} parent=11 // pred_check
          %p218 = pneg %p126
        $region26: #{tpu_custom_call.1} parent=11 // pred_check_branch
          %220 = sbr.rel (%p218) target = $region28
        $region27: #{tpu_custom_call.1} parent=11 // pred_region
          _
        $region28: #{tpu_custom_call.1} parent=11 // pred_fallthru
          _
        // Predicated region
        $region29: #{tpu_custom_call.1} parent=11 // pred_check
          %p221 = pneg %p147
        $region30: #{tpu_custom_call.1} parent=11 // pred_check_branch
          %223 = sbr.rel (%p221) target = $region32
        $region31: #{tpu_custom_call.1} parent=11 // pred_region
          _
        $region32: #{tpu_custom_call.1} parent=11 // pred_fallthru
          _
        // Predicated region
        $region33: #{tpu_custom_call.1} parent=11 // pred_check
          %p224 = pneg %p168
        $region34: #{tpu_custom_call.1} parent=11 // pred_check_branch
          %226 = sbr.rel (%p224) target = $region36
        $region35: #{tpu_custom_call.1} parent=11 // pred_region
          _
        $region36: #{tpu_custom_call.1} parent=11 // pred_fallthru
          _
      $region12: #{tpu_custom_call.1} parent=5 // pred_fallthru
        _
      %p227 = scmp.lt.s32.totalorder %s16, 2
      // Predicated region
      $region37: #{tpu_custom_call.1} parent=5 // pred_check
        %p228 = pneg %p227
      $region38: #{tpu_custom_call.1} parent=5 // pred_check_branch
        %230 = sbr.rel (%p228) target = $region40
      $region39: #{tpu_custom_call.1} parent=5 // pred_region
        // Predicated region
        $region41: #{tpu_custom_call.1} parent=39 // pred_check
          %p231 = pneg %p36
        $region42: #{tpu_custom_call.1} parent=39 // pred_check_branch
          %233 = sbr.rel (%p231) target = $region44
        $region43: #{tpu_custom_call.1} parent=39 // pred_region
          %p234 = scmp.lt.s32.totalorder %s16, 1
          %s235 = scalar_select %p234, %s16, 1
          %s236 = smul.addr %s235, 8
          %s237 = scalar_lea.vmem %s0, %s236
        $region44: #{tpu_custom_call.1} parent=39 // pred_fallthru
          _
      $region40: #{tpu_custom_call.1} parent=5 // pred_fallthru
        _
      %p238 = scmp.le.s32.totalorder 1, %s16
      %p239 = scmp.lt.s32.totalorder %s16, 3
      %p240 = pnand %p238, %p239
      %p241 = pneg %p240
      // Predicated region
      $region45: #{tpu_custom_call.1} parent=5 // pred_check
        _
      $region46: #{tpu_custom_call.1} parent=5 // pred_check_branch
        %243 = sbr.rel (%p240) target = $region48
      $region47: #{tpu_custom_call.1} parent=5 // pred_region
        %s244 = ssub.s32 %s16, 1
        %p245 = scmp.lt.s32.totalorder %s21, 1
        %s246 = scalar_select %p245, %s21, 1
        %s247 = smul.addr %s246, 8
        %s248 = scalar_lea.vmem %s0, %s247
        %p249 = pneg %p42
        %p250 = pneg %p39
        %p251 = pneg %p63
        %p252 = pneg %p60
        %p253 = pneg %p84
        %p254 = pneg %p81
        %p255 = pneg %p105
        %p256 = pneg %p102
        %p257 = pneg %p126
        %p258 = pneg %p123
        %p259 = pneg %p147
        %p260 = pneg %p144
        %p261 = pneg %p168
        %p262 = pneg %p165
        %p263 = pneg %p194
        %p264 = pneg %p191
        %s265 = sand.u32 %s181, 1
        %s266 = scalar_lea.sflag [#allocation3], %s265
        %s267 = sand.u32 %s181, 1
        %s268 = smul.addr %s267, 8
        %s269 = scalar_lea.vmem [#allocation2], %s268
        %p270 = scmp.lt.s32.totalorder %s21, 1
        %s271 = scalar_select %p270, %s21, 1
        %s272 = smul.addr %s271, 8
        %s273 = scalar_lea.vmem %s0, %s272
        %v274 = vld [vmem:[%s273] sm:$0xff]
        %vm275 = vcmask 261120
        %v276 = vsel %vm275, %v274, 0.0
        %277 = vadd.xlane.f32.xlu0 %v276
        %v278 = vpop.xlane.xlu0 %277
        %v279 = vrcp.pop 32.0
        %v280 = vmul.f32 %v278, %v279
        %v281 = vmul.f32 %v274, %v274
        %v282 = vsel %vm275, %v281, 0.0
        %283 = vadd.xlane.f32.xlu0 %v282
        %v284 = vpop.xlane.xlu0 %283
        %v285 = vmul.f32 %v284, %v279
        %v286 = vmul.f32 %v280, %v280
        %v287 = vsub.f32 %v285, %v286
        %v288 = vmax.f32 %v287, 0.0
        %v289 = vsub.f32 %v274, %v280
        %v290 = vadd.f32 %v288, 1e-05
        %v291 = vrsqrt.pop %v290
        %v292 = vmul.f32 %v289, %v291
        %v293 = vld [vmem:[%s1] sm:$0x1]
        %v295 = vlaneseq
        %v296 = vshrl.u32 %v295, 7
        %v297 = vsub.s32 0, %v296
        %v298 = vrot.slane %v293, %v297
        %v300 = vmul.f32 %v292, %v298
        %v301 = vld [vmem:[%s2] sm:$0x1]
        %v303 = vlaneseq
        %v304 = vshrl.u32 %v303, 7
        %v305 = vsub.s32 0, %v304
        %v306 = vrot.slane %v301, %v305
        %v308 = vadd.f32 %v300, %v306
        %v309 = vld [vmem:[%s3] sm:$0xff]
        %v310 = vld [vmem:[%s3 + $0x8] sm:$0xff]
        %v311 = vld [vmem:[%s4] sm:$0x1]
        %v313 = vlaneseq
        %v314 = vshrl.u32 %v313, 7
        %v315 = vsub.s32 0, %v314
        %v316 = vrot.slane %v311, %v315
        %v319 = vsel %vm275, %v308, 0
        %v322 = vsel %vm275, %v309, 0
        %v325 = vsel %vm275, %v310, 0
        %327 = vmatprep.subr.mxu0 0.0
        %328 = vmatpush1.xpose.msra.mxu0 0.0
        %329 = vmatprep.subr.mxu0 0.0
        %330 = vmatpush1.xpose.msra.mxu0 0.0
        %331 = vmatprep.subr.mxu0 0.0
        %332 = vmatpush1.xpose.msra.mxu0 0.0
        %333 = vmatprep.subr.mxu0 0.0
        %334 = vmatpush1.xpose.msra.mxu0 0.0
        %335 = vmatprep.subr.mxu0 0.0
        %336 = vmatpush1.xpose.msra.mxu0 0.0
        %337 = vmatprep.subr.mxu0 0.0
        %338 = vmatpush1.xpose.msra.mxu0 0.0
        %339 = vmatprep.subr.mxu0 0.0
        %340 = vmatpush1.xpose.msra.mxu0 0.0
        %341 = vmatprep.subr.mxu0 0.0
        %342 = vmatpush1.xpose.msra.mxu0 0.0
        %343 = vmatprep.subr.mxu0 0.0
        %344 = vmatpush1.xpose.msra.mxu0 0.0
        %345 = vmatprep.subr.mxu0 0.0
        %346 = vmatpush1.xpose.msra.mxu0 0.0
        %347 = vmatprep.subr.mxu0 0.0
        %348 = vmatpush1.xpose.msra.mxu0 0.0
        %349 = vmatprep.subr.mxu0 0.0
        %350 = vmatpush1.xpose.msra.mxu0 0.0
        %351 = vmatprep.subr.mxu0 0.0
        %352 = vmatpush1.xpose.msra.mxu0 0.0
        %353 = vmatprep.subr.mxu0 0.0
        %354 = vmatpush1.xpose.msra.mxu0 0.0
        %355 = vmatprep.subr.mxu0 0.0
        %356 = vmatpush1.xpose.msra.mxu0 %v325
        %357 = vmatprep.subr.mxu0 0.0
        %358 = vmatpush1.xpose.msra.mxu0 %v322
        %359 = vmatprep.subr.mxu0 0.0
        %360 = vmatpush2.xpose.msra.mxu0 0.0
        %361 = vmatprep.subr.mxu0 0.0
        %362 = vmatpush2.xpose.msra.mxu0 0.0
        %363 = vmatprep.subr.mxu0 0.0
        %364 = vmatpush2.xpose.msra.mxu0 0.0
        %365 = vmatprep.subr.mxu0 0.0
        %366 = vmatpush2.xpose.msra.mxu0 0.0
        %367 = vmatprep.subr.mxu0 0.0
        %368 = vmatpush2.xpose.msra.mxu0 0.0
        %369 = vmatprep.subr.mxu0 0.0
        %370 = vmatpush2.xpose.msra.mxu0 0.0
        %371 = vmatprep.subr.mxu0 0.0
        %372 = vmatpush2.xpose.msra.mxu0 0.0
        %373 = vmatprep.subr.mxu0 0.0
        %374 = vmatpush2.xpose.msra.mxu0 0.0
        %375 = vmatprep.subr.mxu0 0.0
        %376 = vmatpush2.xpose.msra.mxu0 0.0
        %377 = vmatprep.subr.mxu0 0.0
        %378 = vmatpush2.xpose.msra.mxu0 0.0
        %379 = vmatprep.subr.mxu0 0.0
        %380 = vmatpush2.xpose.msra.mxu0 0.0
        %381 = vmatprep.subr.mxu0 0.0
        %382 = vmatpush2.xpose.msra.mxu0 0.0
        %383 = vmatprep.subr.mxu0 0.0
        %384 = vmatpush2.xpose.msra.mxu0 0.0
        %385 = vmatprep.subr.mxu0 0.0
        %386 = vmatpush2.xpose.msra.mxu0 0.0
        %387 = vmatprep.subr.mxu0 0.0
        %388 = vmatpush2.xpose.msra.mxu0 0.0
        %389 = vmatprep.subr.mxu0 0.0
        %390 = vmatpush2.xpose.msra.mxu0 0.0
        %391 = vmatprep.mubr.f32.mxu0 0.0
        %392 = vmatmul.mubr.f32.gmra.mxu0 %v319
        %v393 = vpop.f32.mrf.mxu0
        %v394 = vadd.f32 %v316, %v393
        %v395 = vpop.f32.mrf.mxu0
        %396 = vdwg.mxu0
        %v397 = vmax.f32 %v394, 0.0
        %v398 = vld [vmem:[%s5] sm:$0xff]
        %v399 = vld [vmem:[%s5 + $0x8] sm:$0xff]
        %v400 = vld [vmem:[%s5 + $0x10] sm:$0xff]
        %v401 = vld [vmem:[%s5 + $0x18] sm:$0xff]
        %v402 = vld [vmem:[%s6] sm:$0x1]
        %v404 = vlaneseq
        %v405 = vshrl.u32 %v404, 7
        %v406 = vsub.s32 0, %v405
        %v407 = vrot.slane %v402, %v406
        %vm409 = vcmask 130048
        %v411 = vsel %vm409, %v397, 0
        %v414 = vsel %vm409, %v398, 0
        %v417 = vsel %vm409, %v399, 0
        %v420 = vsel %vm409, %v400, 0
        %v423 = vsel %vm409, %v401, 0
        %425 = vmatprep.subr.mxu0 0.0
        %426 = vmatpush1.xpose.msra.mxu0 0.0
        %427 = vmatprep.subr.mxu0 0.0
        %428 = vmatpush1.xpose.msra.mxu0 0.0
        %429 = vmatprep.subr.mxu0 0.0
        %430 = vmatpush1.xpose.msra.mxu0 0.0
        %431 = vmatprep.subr.mxu0 0.0
        %432 = vmatpush1.xpose.msra.mxu0 0.0
        %433 = vmatprep.subr.mxu0 0.0
        %434 = vmatpush1.xpose.msra.mxu0 0.0
        %435 = vmatprep.subr.mxu0 0.0
        %436 = vmatpush1.xpose.msra.mxu0 0.0
        %437 = vmatprep.subr.mxu0 0.0
        %438 = vmatpush1.xpose.msra.mxu0 0.0
        %439 = vmatprep.subr.mxu0 0.0
        %440 = vmatpush1.xpose.msra.mxu0 0.0
        %441 = vmatprep.subr.mxu0 0.0
        %442 = vmatpush1.xpose.msra.mxu0 0.0
        %443 = vmatprep.subr.mxu0 0.0
        %444 = vmatpush1.xpose.msra.mxu0 0.0
        %445 = vmatprep.subr.mxu0 0.0
        %446 = vmatpush1.xpose.msra.mxu0 0.0
        %447 = vmatprep.subr.mxu0 0.0
        %448 = vmatpush1.xpose.msra.mxu0 0.0
        %449 = vmatprep.subr.mxu0 0.0
        %450 = vmatpush1.xpose.msra.mxu0 %v423
        %451 = vmatprep.subr.mxu0 0.0
        %452 = vmatpush1.xpose.msra.mxu0 %v420
        %453 = vmatprep.subr.mxu0 0.0
        %454 = vmatpush1.xpose.msra.mxu0 %v417
        %455 = vmatprep.subr.mxu0 0.0
        %456 = vmatpush1.xpose.msra.mxu0 %v414
        %457 = vmatprep.subr.mxu0 0.0
        %458 = vmatpush2.xpose.msra.mxu0 0.0
        %459 = vmatprep.subr.mxu0 0.0
        %460 = vmatpush2.xpose.msra.mxu0 0.0
        %461 = vmatprep.subr.mxu0 0.0
        %462 = vmatpush2.xpose.msra.mxu0 0.0
        %463 = vmatprep.subr.mxu0 0.0
        %464 = vmatpush2.xpose.msra.mxu0 0.0
        %465 = vmatprep.subr.mxu0 0.0
        %466 = vmatpush2.xpose.msra.mxu0 0.0
        %467 = vmatprep.subr.mxu0 0.0
        %468 = vmatpush2.xpose.msra.mxu0 0.0
        %469 = vmatprep.subr.mxu0 0.0
        %470 = vmatpush2.xpose.msra.mxu0 0.0
        %471 = vmatprep.subr.mxu0 0.0
        %472 = vmatpush2.xpose.msra.mxu0 0.0
        %473 = vmatprep.subr.mxu0 0.0
        %474 = vmatpush2.xpose.msra.mxu0 0.0
        %475 = vmatprep.subr.mxu0 0.0
        %476 = vmatpush2.xpose.msra.mxu0 0.0
        %477 = vmatprep.subr.mxu0 0.0
        %478 = vmatpush2.xpose.msra.mxu0 0.0
        %479 = vmatprep.subr.mxu0 0.0
        %480 = vmatpush2.xpose.msra.mxu0 0.0
        %481 = vmatprep.subr.mxu0 0.0
        %482 = vmatpush2.xpose.msra.mxu0 0.0
        %483 = vmatprep.subr.mxu0 0.0
        %484 = vmatpush2.xpose.msra.mxu0 0.0
        %485 = vmatprep.subr.mxu0 0.0
        %486 = vmatpush2.xpose.msra.mxu0 0.0
        %487 = vmatprep.subr.mxu0 0.0
        %488 = vmatpush2.xpose.msra.mxu0 0.0
        %489 = vmatprep.mubr.f32.mxu0 0.0
        %490 = vmatmul.mubr.f32.gmra.mxu0 %v411
        %v491 = vpop.f32.mrf.mxu0
        %v492 = vadd.f32 %v407, %v491
        %v493 = vpop.f32.mrf.mxu0
        %494 = vdwg.mxu0
        %495 = vst.msk [vmem:[%s269] sm:$0xff] %vm275, %v492
        %s496 = sand.u32 %s181, 1
        %s497 = scalar_lea.sflag [#allocation3], %s496
        %s498 = sand.u32 %s181, 1
        %s499 = smul.addr %s498, 8
        %s500 = scalar_lea.vmem [#allocation2], %s499
        // Predicated region
        $region49: #{tpu_custom_call.1} parent=47 // pred_check
          %p501 = pneg %p191
        $region50: #{tpu_custom_call.1} parent=47 // pred_check_branch
          %503 = sbr.rel (%p501) target = $region52
        $region51: #{tpu_custom_call.1} parent=47 // pred_region
          %s505 = ssub.s32 128, 128
          %506 = vsyncadd %s497, %s505
          %s507 = smul.addr %s21, 128
          %s508 = scalar_lea.hbm %s7, %s507
          %s510 = sshll.u32 %s500, 4
          %s511 = int_to_ptr.vmem [resolvable:$true] %s510
          %513 = dma.vmem_to_hbm [thread:$0]  %s511, 128, %s508, %s497
        $region52: #{tpu_custom_call.1} parent=47 // pred_fallthru
          _
      $region48: #{tpu_custom_call.1} parent=5 // pred_fallthru
        _
      %p514 = scmp.le.s32.totalorder 2, %s16
      // Predicated region
      $region53: #{tpu_custom_call.1} parent=5 // pred_check
        %p515 = pneg %p514
      $region54: #{tpu_custom_call.1} parent=5 // pred_check_branch
        %517 = sbr.rel (%p515) target = $region56
      $region55: #{tpu_custom_call.1} parent=5 // pred_region
        %s518 = ssub.s32 %s16, 2
        // Predicated region
        $region57: #{tpu_custom_call.1} parent=55 // pred_check
          %p519 = pneg %p197
        $region58: #{tpu_custom_call.1} parent=55 // pred_check_branch
          %521 = sbr.rel (%p519) target = $region60
        $region59: #{tpu_custom_call.1} parent=55 // pred_region
          %s522 = sand.u32 %s182, 1
          %s523 = scalar_lea.sflag [#allocation3], %s522
          %s524 = sand.u32 %s182, 1
          %s525 = smul.addr %s524, 8
          %s526 = scalar_lea.vmem [#allocation2], %s525
          %527 = dma.done %s523, 128
        $region60: #{tpu_custom_call.1} parent=55 // pred_fallthru
          _
      $region56: #{tpu_custom_call.1} parent=5 // pred_fallthru
        _
    $region6: #{tpu_custom_call.1} parent=1 // loop_footer
      %s20 = sadd.s32 1, %s16
    $region7: #{tpu_custom_call.1} parent=1 // loop_footer_branch
      %15 = sbr.rel target = $region3
    $region8: #{tpu_custom_call.1} parent=1 // loop_exit
      _
    %528 = vsyncpa [#allocation3], 1
    %s529 = scalar_lea.sflag [#allocation3], 1
    %530 = vsyncpa %s529, 1

</llo_original>
